<compile_context>
chip_gen: v7x
topology: tpu7x:2x2x1
jax: 0.10.0
libtpu: 0.0.40
codegen_flags: <defaults>
</compile_context>

<pallas_src>
import functools

import jax
import jax.numpy as jnp
from jax import lax
from jax.experimental import pallas as pl
from jax.experimental.pallas import tpu as pltpu


def _learned_time_kernel(ph_ref, ps_ref, time0_ref, wt_ref, ln_ref,
                         out_ref, time_scr, *, steps_per_block, out_size):
    """Runs `steps_per_block` recurrent LearnedTime steps per grid iteration.

    ph_ref    : (Tc, B, out)   other_time @ W1_other + b1  (module branch, precomputed)
    ps_ref    : (Tc, B, out)   other_time @ Ws_other + bs  (shortcut branch, precomputed)
    time0_ref : (B, out)       initial state (read once, at chunk 0)
    wt_ref    : (2, out, out)  stacked [W1_time, Ws_time] (rows of W acting on `time`)
    ln_ref    : (2, out)       rows = [gamma, beta]
    out_ref   : (Tc, B, out)   per-step outputs for this chunk
    time_scr  : (B, out) VMEM  recurrent carry, persists across grid steps
    """
    @pl.when(pl.program_id(0) == 0)
    def _():
        time_scr[...] = time0_ref[...]

    # Hoist all parameter reads / broadcasts out of the step loop.
    w1_t = wt_ref[0]                       # (out, out) module Linear, time rows
    ws_t = wt_ref[1]                       # (out, out) shortcut Linear, time rows
    gamma = ln_ref[0:1, :]                 # (1, out)
    beta = ln_ref[1:2, :]                  # (1, out)
    inv_n = jnp.float32(1.0 / out_size)

    def step(i, time):
        # Module branch: Linear -> ReLU (other_time contribution precomputed).
        h = jnp.maximum(
            jnp.dot(time, w1_t, preferred_element_type=jnp.float32) + ph_ref[i],
            0.0)
        # Shortcut Linear + residual (other_time contribution precomputed).
        y = jnp.dot(time, ws_t, preferred_element_type=jnp.float32) + ps_ref[i] + h

        # LayerNorm over last dim, eps=1e-6, biased variance, one-pass stats.
        s1 = jnp.sum(y, axis=-1, keepdims=True)
        s2 = jnp.sum(y * y, axis=-1, keepdims=True)
        mean = s1 * inv_n
        var = jnp.maximum(s2 * inv_n - mean * mean, 0.0)
        inv_std = lax.rsqrt(var + 1e-6)                     # EUP slot
        new_time = (y - mean) * (inv_std * gamma) + beta

        out_ref[i] = new_time
        return new_time

    time_scr[...] = lax.fori_loop(0, steps_per_block, step, time_scr[...],
                                  unroll=True)


@functools.partial(jax.jit, static_argnames=("steps_per_block",))
def learned_time_rollout(time0, other_seq, w1, b1, ws, bs, gamma, beta,
                         *, steps_per_block=8):
    """Run T LearnedTime.forward(other_time) steps in one pallas_call.

    time0     : (B, output_size)           state from reset()
    other_seq : (T, B, other_dim)          one other_time per step
    w1, ws    : (input_size, output_size)  pre-transposed Linear weights
    returns   : (T, B, output_size)        self.time after each step
    """
    T, B, other_dim = other_seq.shape
    in_size, out_size = w1.shape
    assert in_size == out_size + other_dim

    tc = min(steps_per_block, T)
    num_chunks = pl.cdiv(T, tc)
    t_pad = num_chunks * tc

    # Hoist the non-recurrent half of both Linears out of the recurrence:
    # one (T*B, other_dim) x (other_dim, 2*out) matmul + bias, done in XLA.
    w_other = jnp.concatenate([w1[out_size:], ws[out_size:]], axis=1)  # (other, 2*out)
    b_fused = jnp.concatenate([b1, bs], axis=0)                        # (2*out,)
    proj = other_seq.reshape(T * B, other_dim) @ w_other + b_fused     # (T*B, 2*out)
    proj_h = proj[:, :out_size].reshape(T, B, out_size)
    proj_s = proj[:, out_size:].reshape(T, B, out_size)
    if t_pad != T:
        pad = ((0, t_pad - T), (0, 0), (0, 0))
        proj_h = jnp.pad(proj_h, pad)
        proj_s = jnp.pad(proj_s, pad)

    w_time = jnp.stack([w1[:out_size], ws[:out_size]], axis=0)  # (2, out, out)
    ln_params = jnp.stack([gamma, beta], axis=0)                # (2, out)

    kernel = functools.partial(_learned_time_kernel,
                               steps_per_block=tc, out_size=out_size)
    resident = lambda shape: pl.BlockSpec(shape, lambda c: (0,) * len(shape))

    out = pl.pallas_call(
        kernel,
        out_shape=jax.ShapeDtypeStruct((t_pad, B, out_size), jnp.float32),
        grid=(num_chunks,),
        in_specs=[
            pl.BlockSpec((tc, B, out_size), lambda c: (c, 0, 0)),  # proj_h chunk
            pl.BlockSpec((tc, B, out_size), lambda c: (c, 0, 0)),  # proj_s chunk
            resident((B, out_size)),                               # time0
            resident((2, out_size, out_size)),                     # W_time stack
            resident((2, out_size)),                               # gamma/beta
        ],
        out_specs=pl.BlockSpec((tc, B, out_size), lambda c: (c, 0, 0)),
        scratch_shapes=[pltpu.VMEM((B, out_size), jnp.float32)],
        compiler_params=pltpu.CompilerParams(
            dimension_semantics=("arbitrary",)),   # recurrence -> sequential
    )(proj_h, proj_s, time0, w_time, ln_params)
    return out[:T]


def init_params(key, input_size, output_size):
    """Deterministic init matching torch.nn.Linear default (+-1/sqrt(fan_in))."""
    k1, k2, k3, k4 = jax.random.split(key, 4)
    bound = 1.0 / (input_size ** 0.5)
    w1 = jax.random.uniform(k1, (input_size, output_size), jnp.float32, -bound, bound)
    b1 = jax.random.uniform(k2, (output_size,), jnp.float32, -bound, bound)
    ws = jax.random.uniform(k3, (input_size, output_size), jnp.float32, -bound, bound)
    bs = jax.random.uniform(k4, (output_size,), jnp.float32, -bound, bound)
    gamma = jnp.ones((output_size,), jnp.float32)   # nn.LayerNorm defaults
    beta = jnp.zeros((output_size,), jnp.float32)
    return w1, b1, ws, bs, gamma, beta


def reference_rollout(time0, other_seq, w1, b1, ws, bs, gamma, beta):
    def step(time, other):
        x = jnp.concatenate([time, other], axis=-1)
        h = jnp.maximum(x @ w1 + b1, 0.0)
        sc = x @ ws + bs
        y = sc + h
        mean = jnp.mean(y, axis=-1, keepdims=True)
        var = jnp.mean((y - mean) ** 2, axis=-1, keepdims=True)
        new = (y - mean) / jnp.sqrt(var + 1e-6) * gamma + beta
        return new, new

    _, outs = lax.scan(step, time0, other_seq)
    return outs


if __name__ == "__main__":
    key = jax.random.PRNGKey(0)
    batch = 2
    output_size = 32          # dim of the learned time state
    other_dim = 32            # dim of other_time
    input_size = output_size + other_dim   # 64 -> shortcut is a Linear
    T = 8                     # number of recurrent forward() steps fused
    steps_per_block = 4       # Tc: recurrent steps per grid iteration (2 chunks)

    pkey, okey = jax.random.split(key)
    w1, b1, ws, bs, gamma, beta = init_params(pkey, input_size, output_size)

    # reset(batch): time = zeros(batch, output_size)  (registered buffer)
    time0 = jnp.zeros((batch, output_size), jnp.float32)
    # T successive forward(other_time) calls, fused into one pallas_call
    other_seq = jax.random.normal(okey, (T, batch, other_dim), jnp.float32)

    times = learned_time_rollout(time0, other_seq, w1, b1, ws, bs, gamma, beta,
                                 steps_per_block=steps_per_block)
    times = jax.block_until_ready(times)

    ref = reference_rollout(time0, other_seq, w1, b1, ws, bs, gamma, beta)
    assert times.shape == (T, batch, output_size)
    max_err = float(jnp.max(jnp.abs(times - ref)))
    assert jnp.allclose(times, ref, atol=2e-4, rtol=2e-4), (
        f"mismatch vs reference, max abs err = {max_err}")

    print("KERNEL_OK")
</pallas_src>

<mosaic_0001>
module attributes {stable_mosaic.version = 11 : i64} {
  func.func @_learned_time_kernel(%arg0: i32, %arg1: memref<4x2x32xf32, #tpu.memory_space<vmem>>, %arg2: memref<4x2x32xf32, #tpu.memory_space<vmem>>, %arg3: memref<2x32xf32, #tpu.memory_space<vmem>>, %arg4: memref<2x32x32xf32, #tpu.memory_space<vmem>>, %arg5: memref<2x32xf32, #tpu.memory_space<vmem>>, %arg6: memref<4x2x32xf32, #tpu.memory_space<vmem>>, %arg7: memref<2x32xf32, #tpu.memory_space<vmem>>) attributes {dimension_semantics = [#tpu.dimension_semantics<arbitrary>], iteration_bounds = array<i64: 2>, scalar_prefetch = 0 : i64, scratch_operands = 1 : i64, tpu.core_type = #tpu.core_type<tc>, window_params = [{transform_indices = @transform_0, window_bounds = array<i64: 4, 2, 32>}, {transform_indices = @transform_1, window_bounds = array<i64: 4, 2, 32>}, {pipeline_mode = #tpu.pipeline_mode<synchronous>, transform_indices = @transform_2, window_bounds = array<i64: 2, 32>}, {pipeline_mode = #tpu.pipeline_mode<synchronous>, transform_indices = @transform_3, window_bounds = array<i64: 2, 32, 32>}, {pipeline_mode = #tpu.pipeline_mode<synchronous>, transform_indices = @transform_4, window_bounds = array<i64: 2, 32>}, {transform_indices = @transform_5, window_bounds = array<i64: 4, 2, 32>}]} {
    %c0_i32 = arith.constant 0 : i32
    %0 = arith.cmpi eq, %arg0, %c0_i32 : i32
    %1 = arith.extui %0 : i1 to i32
    %c0_i32_0 = arith.constant 0 : i32
    %2 = arith.cmpi ne, %1, %c0_i32_0 : i32
    scf.if %2 {
      %c0_66 = arith.constant 0 : index
      %c0_67 = arith.constant 0 : index
      %175 = vector.load %arg3[%c0_66, %c0_67] : memref<2x32xf32, #tpu.memory_space<vmem>>, vector<2x32xf32>
      %c0_68 = arith.constant 0 : index
      %c0_69 = arith.constant 0 : index
      %176 = vector.load %arg7[%c0_68, %c0_69] : memref<2x32xf32, #tpu.memory_space<vmem>>, vector<2x32xf32>
      tpu.vector_store %arg7[%c0_68, %c0_69], %175 {strides = array<i32>} : memref<2x32xf32, #tpu.memory_space<vmem>>, vector<2x32xf32>,
    } else {
    }
    %c0 = arith.constant 0 : index
    %c0_1 = arith.constant 0 : index
    %c0_2 = arith.constant 0 : index
    %3 = vector.load %arg4[%c0, %c0_1, %c0_2] : memref<2x32x32xf32, #tpu.memory_space<vmem>>, vector<1x32x32xf32>
    %4 = vector.shape_cast %3 : vector<1x32x32xf32> to vector<32x32xf32>
    %c1 = arith.constant 1 : index
    %c0_3 = arith.constant 0 : index
    %c0_4 = arith.constant 0 : index
    %5 = vector.load %arg4[%c1, %c0_3, %c0_4] : memref<2x32x32xf32, #tpu.memory_space<vmem>>, vector<1x32x32xf32>
    %6 = vector.shape_cast %5 : vector<1x32x32xf32> to vector<32x32xf32>
    %c0_5 = arith.constant 0 : index
    %c0_6 = arith.constant 0 : index
    %7 = vector.load %arg5[%c0_5, %c0_6] : memref<2x32xf32, #tpu.memory_space<vmem>>, vector<1x32xf32>
    %c1_7 = arith.constant 1 : index
    %c0_8 = arith.constant 0 : index
    %8 = vector.load %arg5[%c1_7, %c0_8] : memref<2x32xf32, #tpu.memory_space<vmem>>, vector<1x32xf32>
    %c0_9 = arith.constant 0 : index
    %c0_10 = arith.constant 0 : index
    %9 = vector.load %arg7[%c0_9, %c0_10] : memref<2x32xf32, #tpu.memory_space<vmem>>, vector<2x32xf32>
    %cst = arith.constant 3.125000e-02 : f32
    %c0_i32_11 = arith.constant 0 : i32
    %cst_12 = arith.constant dense<0.000000e+00> : vector<2x32xf32>
    %10 = tpu.matmul %9, %4, %cst_12 {dimension_numbers = #tpu.dot_dimension_numbers<[1], [0], [0], [1], [0, 0, 1, 1], [], []>} : vector<2x32xf32>, vector<32x32xf32>, vector<2x32xf32> -> vector<2x32xf32>
    %11 = arith.index_cast %c0_i32_11 : i32 to index
    %c0_13 = arith.constant 0 : index
    %c0_14 = arith.constant 0 : index
    %12 = vector.load %arg1[%11, %c0_13, %c0_14] : memref<4x2x32xf32, #tpu.memory_space<vmem>>, vector<1x2x32xf32>
    %13 = vector.shape_cast %12 : vector<1x2x32xf32> to vector<2x32xf32>
    %14 = arith.addf %10, %13 : vector<2x32xf32>
    %cst_15 = arith.constant 0.000000e+00 : f32
    %15 = vector.broadcast %cst_15 : f32 to vector<2x32xf32>
    %16 = arith.maximumf %14, %15 : vector<2x32xf32>
    %cst_16 = arith.constant dense<0.000000e+00> : vector<2x32xf32>
    %17 = tpu.matmul %9, %6, %cst_16 {dimension_numbers = #tpu.dot_dimension_numbers<[1], [0], [0], [1], [0, 0, 1, 1], [], []>} : vector<2x32xf32>, vector<32x32xf32>, vector<2x32xf32> -> vector<2x32xf32>
    %18 = arith.index_cast %c0_i32_11 : i32 to index
    %c0_17 = arith.constant 0 : index
    %c0_18 = arith.constant 0 : index
    %19 = vector.load %arg2[%18, %c0_17, %c0_18] : memref<4x2x32xf32, #tpu.memory_space<vmem>>, vector<1x2x32xf32>
    %20 = vector.shape_cast %19 : vector<1x2x32xf32> to vector<2x32xf32>
    %21 = arith.addf %17, %20 : vector<2x32xf32>
    %22 = arith.addf %21, %16 : vector<2x32xf32>
    %cst_19 = arith.constant dense<0.000000e+00> : vector<2xf32>
    %23 = vector.multi_reduction <add>, %22, %cst_19 [1] : vector<2x32xf32> to vector<2xf32>
    %24 = vector.shape_cast %23 : vector<2xf32> to vector<2x1xf32>
    %25 = arith.mulf %22, %22 : vector<2x32xf32>
    %cst_20 = arith.constant dense<0.000000e+00> : vector<2xf32>
    %26 = vector.multi_reduction <add>, %25, %cst_20 [1] : vector<2x32xf32> to vector<2xf32>
    %27 = vector.shape_cast %26 : vector<2xf32> to vector<2x1xf32>
    %28 = vector.broadcast %cst : f32 to vector<2x1xf32>
    %29 = arith.mulf %24, %28 : vector<2x1xf32>
    %30 = vector.broadcast %cst : f32 to vector<2x1xf32>
    %31 = arith.mulf %27, %30 : vector<2x1xf32>
    %32 = arith.mulf %29, %29 : vector<2x1xf32>
    %33 = arith.subf %31, %32 : vector<2x1xf32>
    %cst_21 = arith.constant 0.000000e+00 : f32
    %34 = vector.broadcast %cst_21 : f32 to vector<2x1xf32>
    %35 = arith.maximumf %33, %34 : vector<2x1xf32>
    %cst_22 = arith.constant 9.99999997E-7 : f32
    %36 = vector.broadcast %cst_22 : f32 to vector<2x1xf32>
    %37 = arith.addf %35, %36 : vector<2x1xf32>
    %38 = math.rsqrt %37 : vector<2x1xf32>
    %39 = vector.broadcast %29 : vector<2x1xf32> to vector<2x32xf32>
    %40 = arith.subf %22, %39 : vector<2x32xf32>
    %41 = vector.broadcast %38 : vector<2x1xf32> to vector<2x32xf32>
    %42 = vector.broadcast %7 : vector<1x32xf32> to vector<2x32xf32>
    %43 = arith.mulf %41, %42 : vector<2x32xf32>
    %44 = arith.mulf %40, %43 : vector<2x32xf32>
    %45 = vector.broadcast %8 : vector<1x32xf32> to vector<2x32xf32>
    %46 = arith.addf %44, %45 : vector<2x32xf32>
    %47 = arith.index_cast %c0_i32_11 : i32 to index
    %c0_23 = arith.constant 0 : index
    %c0_24 = arith.constant 0 : index
    %48 = vector.load %arg6[%47, %c0_23, %c0_24] : memref<4x2x32xf32, #tpu.memory_space<vmem>>, vector<1x2x32xf32>
    %49 = vector.shape_cast %48 : vector<1x2x32xf32> to vector<2x32xf32>
    %50 = vector.shape_cast %46 : vector<2x32xf32> to vector<1x2x32xf32>
    tpu.vector_store %arg6[%47, %c0_23, %c0_24], %50 {strides = array<i32>} : memref<4x2x32xf32, #tpu.memory_space<vmem>>, vector<1x2x32xf32>,
    %c1_i32 = arith.constant 1 : i32
    %cst_25 = arith.constant dense<0.000000e+00> : vector<2x32xf32>
    %51 = tpu.matmul %46, %4, %cst_25 {dimension_numbers = #tpu.dot_dimension_numbers<[1], [0], [0], [1], [0, 0, 1, 1], [], []>} : vector<2x32xf32>, vector<32x32xf32>, vector<2x32xf32> -> vector<2x32xf32>
    %52 = arith.index_cast %c1_i32 : i32 to index
    %c0_26 = arith.constant 0 : index
    %c0_27 = arith.constant 0 : index
    %53 = vector.load %arg1[%52, %c0_26, %c0_27] : memref<4x2x32xf32, #tpu.memory_space<vmem>>, vector<1x2x32xf32>
    %54 = vector.shape_cast %53 : vector<1x2x32xf32> to vector<2x32xf32>
    %55 = arith.addf %51, %54 : vector<2x32xf32>
    %cst_28 = arith.constant 0.000000e+00 : f32
    %56 = vector.broadcast %cst_28 : f32 to vector<2x32xf32>
    %57 = arith.maximumf %55, %56 : vector<2x32xf32>
    %cst_29 = arith.constant dense<0.000000e+00> : vector<2x32xf32>
    %58 = tpu.matmul %46, %6, %cst_29 {dimension_numbers = #tpu.dot_dimension_numbers<[1], [0], [0], [1], [0, 0, 1, 1], [], []>} : vector<2x32xf32>, vector<32x32xf32>, vector<2x32xf32> -> vector<2x32xf32>
    %59 = arith.index_cast %c1_i32 : i32 to index
    %c0_30 = arith.constant 0 : index
    %c0_31 = arith.constant 0 : index
    %60 = vector.load %arg2[%59, %c0_30, %c0_31] : memref<4x2x32xf32, #tpu.memory_space<vmem>>, vector<1x2x32xf32>
    %61 = vector.shape_cast %60 : vector<1x2x32xf32> to vector<2x32xf32>
    %62 = arith.addf %58, %61 : vector<2x32xf32>
    %63 = arith.addf %62, %57 : vector<2x32xf32>
    %cst_32 = arith.constant dense<0.000000e+00> : vector<2xf32>
    %64 = vector.multi_reduction <add>, %63, %cst_32 [1] : vector<2x32xf32> to vector<2xf32>
    %65 = vector.shape_cast %64 : vector<2xf32> to vector<2x1xf32>
    %66 = arith.mulf %63, %63 : vector<2x32xf32>
    %cst_33 = arith.constant dense<0.000000e+00> : vector<2xf32>
    %67 = vector.multi_reduction <add>, %66, %cst_33 [1] : vector<2x32xf32> to vector<2xf32>
    %68 = vector.shape_cast %67 : vector<2xf32> to vector<2x1xf32>
    %69 = vector.broadcast %cst : f32 to vector<2x1xf32>
    %70 = arith.mulf %65, %69 : vector<2x1xf32>
    %71 = vector.broadcast %cst : f32 to vector<2x1xf32>
    %72 = arith.mulf %68, %71 : vector<2x1xf32>
    %73 = arith.mulf %70, %70 : vector<2x1xf32>
    %74 = arith.subf %72, %73 : vector<2x1xf32>
    %cst_34 = arith.constant 0.000000e+00 : f32
    %75 = vector.broadcast %cst_34 : f32 to vector<2x1xf32>
    %76 = arith.maximumf %74, %75 : vector<2x1xf32>
    %cst_35 = arith.constant 9.99999997E-7 : f32
    %77 = vector.broadcast %cst_35 : f32 to vector<2x1xf32>
    %78 = arith.addf %76, %77 : vector<2x1xf32>
    %79 = math.rsqrt %78 : vector<2x1xf32>
    %80 = vector.broadcast %70 : vector<2x1xf32> to vector<2x32xf32>
    %81 = arith.subf %63, %80 : vector<2x32xf32>
    %82 = vector.broadcast %79 : vector<2x1xf32> to vector<2x32xf32>
    %83 = vector.broadcast %7 : vector<1x32xf32> to vector<2x32xf32>
    %84 = arith.mulf %82, %83 : vector<2x32xf32>
    %85 = arith.mulf %81, %84 : vector<2x32xf32>
    %86 = vector.broadcast %8 : vector<1x32xf32> to vector<2x32xf32>
    %87 = arith.addf %85, %86 : vector<2x32xf32>
    %88 = arith.index_cast %c1_i32 : i32 to index
    %c0_36 = arith.constant 0 : index
    %c0_37 = arith.constant 0 : index
    %89 = vector.load %arg6[%88, %c0_36, %c0_37] : memref<4x2x32xf32, #tpu.memory_space<vmem>>, vector<1x2x32xf32>
    %90 = vector.shape_cast %89 : vector<1x2x32xf32> to vector<2x32xf32>
    %91 = vector.shape_cast %87 : vector<2x32xf32> to vector<1x2x32xf32>
    tpu.vector_store %arg6[%88, %c0_36, %c0_37], %91 {strides = array<i32>} : memref<4x2x32xf32, #tpu.memory_space<vmem>>, vector<1x2x32xf32>,
    %c2_i32 = arith.constant 2 : i32
    %cst_38 = arith.constant dense<0.000000e+00> : vector<2x32xf32>
    %92 = tpu.matmul %87, %4, %cst_38 {dimension_numbers = #tpu.dot_dimension_numbers<[1], [0], [0], [1], [0, 0, 1, 1], [], []>} : vector<2x32xf32>, vector<32x32xf32>, vector<2x32xf32> -> vector<2x32xf32>
    %93 = arith.index_cast %c2_i32 : i32 to index
    %c0_39 = arith.constant 0 : index
    %c0_40 = arith.constant 0 : index
    %94 = vector.load %arg1[%93, %c0_39, %c0_40] : memref<4x2x32xf32, #tpu.memory_space<vmem>>, vector<1x2x32xf32>
    %95 = vector.shape_cast %94 : vector<1x2x32xf32> to vector<2x32xf32>
    %96 = arith.addf %92, %95 : vector<2x32xf32>
    %cst_41 = arith.constant 0.000000e+00 : f32
    %97 = vector.broadcast %cst_41 : f32 to vector<2x32xf32>
    %98 = arith.maximumf %96, %97 : vector<2x32xf32>
    %cst_42 = arith.constant dense<0.000000e+00> : vector<2x32xf32>
    %99 = tpu.matmul %87, %6, %cst_42 {dimension_numbers = #tpu.dot_dimension_numbers<[1], [0], [0], [1], [0, 0, 1, 1], [], []>} : vector<2x32xf32>, vector<32x32xf32>, vector<2x32xf32> -> vector<2x32xf32>
    %100 = arith.index_cast %c2_i32 : i32 to index
    %c0_43 = arith.constant 0 : index
    %c0_44 = arith.constant 0 : index
    %101 = vector.load %arg2[%100, %c0_43, %c0_44] : memref<4x2x32xf32, #tpu.memory_space<vmem>>, vector<1x2x32xf32>
    %102 = vector.shape_cast %101 : vector<1x2x32xf32> to vector<2x32xf32>
    %103 = arith.addf %99, %102 : vector<2x32xf32>
    %104 = arith.addf %103, %98 : vector<2x32xf32>
    %cst_45 = arith.constant dense<0.000000e+00> : vector<2xf32>
    %105 = vector.multi_reduction <add>, %104, %cst_45 [1] : vector<2x32xf32> to vector<2xf32>
    %106 = vector.shape_cast %105 : vector<2xf32> to vector<2x1xf32>
    %107 = arith.mulf %104, %104 : vector<2x32xf32>
    %cst_46 = arith.constant dense<0.000000e+00> : vector<2xf32>
    %108 = vector.multi_reduction <add>, %107, %cst_46 [1] : vector<2x32xf32> to vector<2xf32>
    %109 = vector.shape_cast %108 : vector<2xf32> to vector<2x1xf32>
    %110 = vector.broadcast %cst : f32 to vector<2x1xf32>
    %111 = arith.mulf %106, %110 : vector<2x1xf32>
    %112 = vector.broadcast %cst : f32 to vector<2x1xf32>
    %113 = arith.mulf %109, %112 : vector<2x1xf32>
    %114 = arith.mulf %111, %111 : vector<2x1xf32>
    %115 = arith.subf %113, %114 : vector<2x1xf32>
    %cst_47 = arith.constant 0.000000e+00 : f32
    %116 = vector.broadcast %cst_47 : f32 to vector<2x1xf32>
    %117 = arith.maximumf %115, %116 : vector<2x1xf32>
    %cst_48 = arith.constant 9.99999997E-7 : f32
    %118 = vector.broadcast %cst_48 : f32 to vector<2x1xf32>
    %119 = arith.addf %117, %118 : vector<2x1xf32>
    %120 = math.rsqrt %119 : vector<2x1xf32>
    %121 = vector.broadcast %111 : vector<2x1xf32> to vector<2x32xf32>
    %122 = arith.subf %104, %121 : vector<2x32xf32>
    %123 = vector.broadcast %120 : vector<2x1xf32> to vector<2x32xf32>
    %124 = vector.broadcast %7 : vector<1x32xf32> to vector<2x32xf32>
    %125 = arith.mulf %123, %124 : vector<2x32xf32>
    %126 = arith.mulf %122, %125 : vector<2x32xf32>
    %127 = vector.broadcast %8 : vector<1x32xf32> to vector<2x32xf32>
    %128 = arith.addf %126, %127 : vector<2x32xf32>
    %129 = arith.index_cast %c2_i32 : i32 to index
    %c0_49 = arith.constant 0 : index
    %c0_50 = arith.constant 0 : index
    %130 = vector.load %arg6[%129, %c0_49, %c0_50] : memref<4x2x32xf32, #tpu.memory_space<vmem>>, vector<1x2x32xf32>
    %131 = vector.shape_cast %130 : vector<1x2x32xf32> to vector<2x32xf32>
    %132 = vector.shape_cast %128 : vector<2x32xf32> to vector<1x2x32xf32>
    tpu.vector_store %arg6[%129, %c0_49, %c0_50], %132 {strides = array<i32>} : memref<4x2x32xf32, #tpu.memory_space<vmem>>, vector<1x2x32xf32>,
    %c3_i32 = arith.constant 3 : i32
    %cst_51 = arith.constant dense<0.000000e+00> : vector<2x32xf32>
    %133 = tpu.matmul %128, %4, %cst_51 {dimension_numbers = #tpu.dot_dimension_numbers<[1], [0], [0], [1], [0, 0, 1, 1], [], []>} : vector<2x32xf32>, vector<32x32xf32>, vector<2x32xf32> -> vector<2x32xf32>
    %134 = arith.index_cast %c3_i32 : i32 to index
    %c0_52 = arith.constant 0 : index
    %c0_53 = arith.constant 0 : index
    %135 = vector.load %arg1[%134, %c0_52, %c0_53] : memref<4x2x32xf32, #tpu.memory_space<vmem>>, vector<1x2x32xf32>
    %136 = vector.shape_cast %135 : vector<1x2x32xf32> to vector<2x32xf32>
    %137 = arith.addf %133, %136 : vector<2x32xf32>
    %cst_54 = arith.constant 0.000000e+00 : f32
    %138 = vector.broadcast %cst_54 : f32 to vector<2x32xf32>
    %139 = arith.maximumf %137, %138 : vector<2x32xf32>
    %cst_55 = arith.constant dense<0.000000e+00> : vector<2x32xf32>
    %140 = tpu.matmul %128, %6, %cst_55 {dimension_numbers = #tpu.dot_dimension_numbers<[1], [0], [0], [1], [0, 0, 1, 1], [], []>} : vector<2x32xf32>, vector<32x32xf32>, vector<2x32xf32> -> vector<2x32xf32>
    %141 = arith.index_cast %c3_i32 : i32 to index
    %c0_56 = arith.constant 0 : index
    %c0_57 = arith.constant 0 : index
    %142 = vector.load %arg2[%141, %c0_56, %c0_57] : memref<4x2x32xf32, #tpu.memory_space<vmem>>, vector<1x2x32xf32>
    %143 = vector.shape_cast %142 : vector<1x2x32xf32> to vector<2x32xf32>
    %144 = arith.addf %140, %143 : vector<2x32xf32>
    %145 = arith.addf %144, %139 : vector<2x32xf32>
    %cst_58 = arith.constant dense<0.000000e+00> : vector<2xf32>
    %146 = vector.multi_reduction <add>, %145, %cst_58 [1] : vector<2x32xf32> to vector<2xf32>
    %147 = vector.shape_cast %146 : vector<2xf32> to vector<2x1xf32>
    %148 = arith.mulf %145, %145 : vector<2x32xf32>
    %cst_59 = arith.constant dense<0.000000e+00> : vector<2xf32>
    %149 = vector.multi_reduction <add>, %148, %cst_59 [1] : vector<2x32xf32> to vector<2xf32>
    %150 = vector.shape_cast %149 : vector<2xf32> to vector<2x1xf32>
    %151 = vector.broadcast %cst : f32 to vector<2x1xf32>
    %152 = arith.mulf %147, %151 : vector<2x1xf32>
    %153 = vector.broadcast %cst : f32 to vector<2x1xf32>
    %154 = arith.mulf %150, %153 : vector<2x1xf32>
    %155 = arith.mulf %152, %152 : vector<2x1xf32>
    %156 = arith.subf %154, %155 : vector<2x1xf32>
    %cst_60 = arith.constant 0.000000e+00 : f32
    %157 = vector.broadcast %cst_60 : f32 to vector<2x1xf32>
    %158 = arith.maximumf %156, %157 : vector<2x1xf32>
    %cst_61 = arith.constant 9.99999997E-7 : f32
    %159 = vector.broadcast %cst_61 : f32 to vector<2x1xf32>
    %160 = arith.addf %158, %159 : vector<2x1xf32>
    %161 = math.rsqrt %160 : vector<2x1xf32>
    %162 = vector.broadcast %152 : vector<2x1xf32> to vector<2x32xf32>
    %163 = arith.subf %145, %162 : vector<2x32xf32>
    %164 = vector.broadcast %161 : vector<2x1xf32> to vector<2x32xf32>
    %165 = vector.broadcast %7 : vector<1x32xf32> to vector<2x32xf32>
    %166 = arith.mulf %164, %165 : vector<2x32xf32>
    %167 = arith.mulf %163, %166 : vector<2x32xf32>
    %168 = vector.broadcast %8 : vector<1x32xf32> to vector<2x32xf32>
    %169 = arith.addf %167, %168 : vector<2x32xf32>
    %170 = arith.index_cast %c3_i32 : i32 to index
    %c0_62 = arith.constant 0 : index
    %c0_63 = arith.constant 0 : index
    %171 = vector.load %arg6[%170, %c0_62, %c0_63] : memref<4x2x32xf32, #tpu.memory_space<vmem>>, vector<1x2x32xf32>
    %172 = vector.shape_cast %171 : vector<1x2x32xf32> to vector<2x32xf32>
    %173 = vector.shape_cast %169 : vector<2x32xf32> to vector<1x2x32xf32>
    tpu.vector_store %arg6[%170, %c0_62, %c0_63], %173 {strides = array<i32>} : memref<4x2x32xf32, #tpu.memory_space<vmem>>, vector<1x2x32xf32>,
    %c4_i32 = arith.constant 4 : i32
    %c0_64 = arith.constant 0 : index
    %c0_65 = arith.constant 0 : index
    %174 = vector.load %arg7[%c0_64, %c0_65] : memref<2x32xf32, #tpu.memory_space<vmem>>, vector<2x32xf32>
    tpu.vector_store %arg7[%c0_64, %c0_65], %169 {strides = array<i32>} : memref<2x32xf32, #tpu.memory_space<vmem>>, vector<2x32xf32>,
    return
  }
  func.func @transform_0(%arg0: i32) -> (i32, i32, i32) {
    %c0_i32 = arith.constant 0 : i32
    %c0_i32_0 = arith.constant 0 : i32
    %c0_i32_1 = arith.constant 0 : i32
    return %arg0, %c0_i32, %c0_i32_0 : i32, i32, i32
  }
  func.func @transform_1(%arg0: i32) -> (i32, i32, i32) {
    %c0_i32 = arith.constant 0 : i32
    %c0_i32_0 = arith.constant 0 : i32
    %c0_i32_1 = arith.constant 0 : i32
    return %arg0, %c0_i32, %c0_i32_0 : i32, i32, i32
  }
  func.func @transform_2(%arg0: i32) -> (i32, i32) {
    %c0_i32 = arith.constant 0 : i32
    %c0_i32_0 = arith.constant 0 : i32
    %c0_i32_1 = arith.constant 0 : i32
    return %c0_i32, %c0_i32_0 : i32, i32
  }
  func.func @transform_3(%arg0: i32) -> (i32, i32, i32) {
    %c0_i32 = arith.constant 0 : i32
    %c0_i32_0 = arith.constant 0 : i32
    %c0_i32_1 = arith.constant 0 : i32
    %c0_i32_2 = arith.constant 0 : i32
    return %c0_i32, %c0_i32_0, %c0_i32_1 : i32, i32, i32
  }
  func.func @transform_4(%arg0: i32) -> (i32, i32) {
    %c0_i32 = arith.constant 0 : i32
    %c0_i32_0 = arith.constant 0 : i32
    %c0_i32_1 = arith.constant 0 : i32
    return %c0_i32, %c0_i32_0 : i32, i32
  }
  func.func @transform_5(%arg0: i32) -> (i32, i32, i32) {
    %c0_i32 = arith.constant 0 : i32
    %c0_i32_0 = arith.constant 0 : i32
    %c0_i32_1 = arith.constant 0 : i32
    return %arg0, %c0_i32, %c0_i32_0 : i32, i32, i32
  }
}

</mosaic_0001>

<llo_original>
// kernel: learned_time_rollout.1
$region0: #{learned_time_rollout.1}
  #allocation0 [shape = 'u32[]', space=smem, size = 0x4, offset = 0x4, fixed_abs, tag = 'smem constant byte address 0x4 - core index']
  #allocation1 [shape = 'u32[144,128]{1,0:T(1,128)}', space=vmem, size = 0x12000, scoped, tag = 'internal scratch']
  #allocation2 [shape = 'f32[2,32]{1,0:T(2,128)}', space=vmem, size = 0x400, scoped, tag = 'scratch operand']
  %s0 = inlined_call_operand.vmem [shape: f32[8,2,32], index: 0, kind: input, shape index: {}]
  %s1 = inlined_call_operand.vmem [shape: f32[8,2,32], index: 1, kind: input, shape index: {}]
  %s2 = inlined_call_operand.vmem [shape: f32[2,32], index: 2, kind: input, shape index: {}]
  %s3 = inlined_call_operand.vmem [shape: f32[2,32,32], index: 3, kind: input, shape index: {}]
  %s4 = inlined_call_operand.vmem [shape: f32[2,32], index: 4, kind: input, shape index: {}]
  %s5 = inlined_call_operand.hbm [shape: f32[8,2,32], index: 5, kind: output, shape index: {}]
  %s6 = sld [smem:[#allocation0]]
  $region57: #{learned_time_rollout.1} parent=0
    _
  %s8 = ssub.s32 1, %s6
  %s9 = scalar_select 0, %s8, %s6
  $region1: #{learned_time_rollout.1} parent=0
    #allocation3 [shape = 'u8[8192]{0}', space=vmem, size = 0x2000, scoped, tag = 'output window, operand 0']
    #allocation4 [shape = 's32[2]{0}', space=sflag, size = 0x8, scoped, tag = 'scoped memory for learned_time_rollout.1']
    %10 = vsyncpa [#allocation4], 0
    %s11 = scalar_lea.sflag [#allocation4], 1
    %12 = vsyncpa %s11, 0
    loop: start=0, step=1, limit=4
    $region2: #{learned_time_rollout.1} parent=1 // loop_pre_header
      _
    $region3: #{learned_time_rollout.1} parent=1 // loop_header
      %s14 = sphi 0, %s18
      %p15 = scmp.ge.s32.totalorder %s14, 4
      %s24 = sphi 0, %s26
      %s27 = sphi 0, %s24
      %s28 = sphi 0, %s27
      %s44 = sphi 0, %s28
      %s50 = sphi 0, %s52
      %s53 = sphi 0, %s50
      %s54 = sphi 0, %s53
      %s70 = sphi 0, %s54
      %s74 = sphi 0, %s74
      %s76 = sphi 0, %s74
      %s77 = sphi 0, %s76
      %s91 = sphi 0, %s77
      %s95 = sphi 0, %s95
      %s97 = sphi 0, %s95
      %s98 = sphi 0, %s97
      %s112 = sphi 0, %s98
      %s116 = sphi 0, %s116
      %s118 = sphi 0, %s116
      %s119 = sphi 0, %s118
      %s133 = sphi 0, %s119
      %s139 = sphi 0, %s141
      %s142 = sphi 0, %s139
      %s143 = sphi 0, %s142
      %s159 = sphi 0, %s143
    $region4: #{learned_time_rollout.1} parent=1 // loop_header_branch
      %17 = sbr.rel (%p15) target = $region8
    $region5: #{learned_time_rollout.1} parent=1 // loop_body
      %s19 = ssub.s32 %s14, 1
      %s20 = ssub.s32 %s14, 2
      %s21 = sadd.s32 %s14, 1
      %s22 = ssub.s32 %s14, %s21
      %p23 = scmp.eq.s32.totalorder %s22, 0
      %s25 = sadd.s32 %s24, 1
      %s26 = scalar_select %p23, %s24, %s25
      %p29 = pneg %p23
      %p30 = scmp.eq.s32.totalorder %s14, 1
      %p31 = por %p29, %p30
      %p32 = scmp.ne.s32.totalorder %s24, %s27
      %p33 = scmp.eq.s32.totalorder %s14, 0
      %p34 = por %p32, %p33
      %p35 = scmp.ne.s32.totalorder %s24, %s27
      %p36 = scmp.eq.s32.totalorder %s19, 1
      %p37 = por %p35, %p36
      %p38 = scmp.ne.s32.totalorder %s27, %s28
      %p39 = scmp.eq.s32.totalorder %s19, 0
      %p40 = por %p38, %p39
      %p41 = scmp.ne.s32.totalorder %s27, %s28
      %p42 = scmp.eq.s32.totalorder %s20, 1
      %p43 = por %p41, %p42
      %p45 = scmp.ne.s32.totalorder %s28, %s44
      %p46 = scmp.eq.s32.totalorder %s20, 0
      %p47 = por %p45, %p46
      %s48 = ssub.s32 %s14, %s21
      %p49 = scmp.eq.s32.totalorder %s48, 0
      %s51 = sadd.s32 %s50, 1
      %s52 = scalar_select %p49, %s50, %s51
      %p55 = pneg %p49
      %p56 = scmp.eq.s32.totalorder %s14, 1
      %p57 = por %p55, %p56
      %p58 = scmp.ne.s32.totalorder %s50, %s53
      %p59 = scmp.eq.s32.totalorder %s14, 0
      %p60 = por %p58, %p59
      %p61 = scmp.ne.s32.totalorder %s50, %s53
      %p62 = scmp.eq.s32.totalorder %s19, 1
      %p63 = por %p61, %p62
      %p64 = scmp.ne.s32.totalorder %s53, %s54
      %p65 = scmp.eq.s32.totalorder %s19, 0
      %p66 = por %p64, %p65
      %p67 = scmp.ne.s32.totalorder %s53, %s54
      %p68 = scmp.eq.s32.totalorder %s20, 1
      %p69 = por %p67, %p68
      %p71 = scmp.ne.s32.totalorder %s54, %s70
      %p72 = scmp.eq.s32.totalorder %s20, 0
      %p73 = por %p71, %p72
      %s75 = sadd.s32 %s74, 1
      %p78 = scmp.eq.s32.totalorder %s14, 1
      %p79 = scmp.ne.s32.totalorder %s74, %s76
      %p80 = scmp.eq.s32.totalorder %s14, 0
      %p81 = por %p79, %p80
      %p82 = scmp.ne.s32.totalorder %s74, %s76
      %p83 = scmp.eq.s32.totalorder %s19, 1
      %p84 = por %p82, %p83
      %p85 = scmp.ne.s32.totalorder %s76, %s77
      %p86 = scmp.eq.s32.totalorder %s19, 0
      %p87 = por %p85, %p86
      %p88 = scmp.ne.s32.totalorder %s76, %s77
      %p89 = scmp.eq.s32.totalorder %s20, 1
      %p90 = por %p88, %p89
      %p92 = scmp.ne.s32.totalorder %s77, %s91
      %p93 = scmp.eq.s32.totalorder %s20, 0
      %p94 = por %p92, %p93
      %s96 = sadd.s32 %s95, 1
      %p99 = scmp.eq.s32.totalorder %s14, 1
      %p100 = scmp.ne.s32.totalorder %s95, %s97
      %p101 = scmp.eq.s32.totalorder %s14, 0
      %p102 = por %p100, %p101
      %p103 = scmp.ne.s32.totalorder %s95, %s97
      %p104 = scmp.eq.s32.totalorder %s19, 1
      %p105 = por %p103, %p104
      %p106 = scmp.ne.s32.totalorder %s97, %s98
      %p107 = scmp.eq.s32.totalorder %s19, 0
      %p108 = por %p106, %p107
      %p109 = scmp.ne.s32.totalorder %s97, %s98
      %p110 = scmp.eq.s32.totalorder %s20, 1
      %p111 = por %p109, %p110
      %p113 = scmp.ne.s32.totalorder %s98, %s112
      %p114 = scmp.eq.s32.totalorder %s20, 0
      %p115 = por %p113, %p114
      %s117 = sadd.s32 %s116, 1
      %p120 = scmp.eq.s32.totalorder %s14, 1
      %p121 = scmp.ne.s32.totalorder %s116, %s118
      %p122 = scmp.eq.s32.totalorder %s14, 0
      %p123 = por %p121, %p122
      %p124 = scmp.ne.s32.totalorder %s116, %s118
      %p125 = scmp.eq.s32.totalorder %s19, 1
      %p126 = por %p124, %p125
      %p127 = scmp.ne.s32.totalorder %s118, %s119
      %p128 = scmp.eq.s32.totalorder %s19, 0
      %p129 = por %p127, %p128
      %p130 = scmp.ne.s32.totalorder %s118, %s119
      %p131 = scmp.eq.s32.totalorder %s20, 1
      %p132 = por %p130, %p131
      %p134 = scmp.ne.s32.totalorder %s119, %s133
      %p135 = scmp.eq.s32.totalorder %s20, 0
      %p136 = por %p134, %p135
      %s137 = ssub.s32 %s14, %s21
      %p138 = scmp.eq.s32.totalorder %s137, 0
      %s140 = sadd.s32 %s139, 1
      %s141 = scalar_select %p138, %s139, %s140
      %p144 = pneg %p138
      %p145 = scmp.eq.s32.totalorder %s14, 1
      %p146 = por %p144, %p145
      %p147 = scmp.ne.s32.totalorder %s139, %s142
      %p148 = scmp.eq.s32.totalorder %s14, 0
      %p149 = por %p147, %p148
      %p150 = scmp.ne.s32.totalorder %s139, %s142
      %p151 = scmp.eq.s32.totalorder %s19, 1
      %p152 = por %p150, %p151
      %p153 = scmp.ne.s32.totalorder %s142, %s143
      %p154 = scmp.eq.s32.totalorder %s19, 0
      %p155 = por %p153, %p154
      %p156 = scmp.ne.s32.totalorder %s142, %s143
      %p157 = scmp.eq.s32.totalorder %s20, 1
      %p158 = por %p156, %p157
      %p160 = scmp.ne.s32.totalorder %s143, %s159
      %p161 = scmp.eq.s32.totalorder %s20, 0
      %p162 = por %p160, %p161
      %p163 = scmp.le.s32.totalorder 1, %s14
      %p164 = scmp.lt.s32.totalorder %s14, 3
      %p165 = pnand %p163, %p164
      %p166 = pneg %p165
      // Predicated region
      $region9: #{learned_time_rollout.1} parent=5 // pred_check
        _
      $region10: #{learned_time_rollout.1} parent=5 // pred_check_branch
        %168 = sbr.rel (%p165) target = $region12
      $region11: #{learned_time_rollout.1} parent=5 // pred_region
        %s169 = ssub.s32 %s14, 1
        // Predicated region
        $region13: #{learned_time_rollout.1} parent=11 // pred_check
          %p170 = pneg %p87
        $region14: #{learned_time_rollout.1} parent=11 // pred_check_branch
          %172 = sbr.rel (%p170) target = $region16
        $region15: #{learned_time_rollout.1} parent=11 // pred_region
          _
        $region16: #{learned_time_rollout.1} parent=11 // pred_fallthru
          _
        // Predicated region
        $region17: #{learned_time_rollout.1} parent=11 // pred_check
          %p173 = pneg %p108
        $region18: #{learned_time_rollout.1} parent=11 // pred_check_branch
          %175 = sbr.rel (%p173) target = $region20
        $region19: #{learned_time_rollout.1} parent=11 // pred_region
          _
        $region20: #{learned_time_rollout.1} parent=11 // pred_fallthru
          _
        // Predicated region
        $region21: #{learned_time_rollout.1} parent=11 // pred_check
          %p176 = pneg %p129
        $region22: #{learned_time_rollout.1} parent=11 // pred_check_branch
          %178 = sbr.rel (%p176) target = $region24
        $region23: #{learned_time_rollout.1} parent=11 // pred_region
          _
        $region24: #{learned_time_rollout.1} parent=11 // pred_fallthru
          _
      $region12: #{learned_time_rollout.1} parent=5 // pred_fallthru
        _
      %p179 = scmp.lt.s32.totalorder %s14, 2
      // Predicated region
      $region25: #{learned_time_rollout.1} parent=5 // pred_check
        %p180 = pneg %p179
      $region26: #{learned_time_rollout.1} parent=5 // pred_check_branch
        %182 = sbr.rel (%p180) target = $region28
      $region27: #{learned_time_rollout.1} parent=5 // pred_region
        // Predicated region
        $region29: #{learned_time_rollout.1} parent=27 // pred_check
          %p183 = pneg %p34
        $region30: #{learned_time_rollout.1} parent=27 // pred_check_branch
          %185 = sbr.rel (%p183) target = $region32
        $region31: #{learned_time_rollout.1} parent=27 // pred_region
          %s186 = smul.u32 4, %s14
          %p187 = scmp.lt.s32.totalorder %s186, 7
          %s188 = scalar_select %p187, %s186, 7
          %s189 = smul.addr %s188, 2
          %s190 = scalar_lea.vmem %s0, %s189
          %s191 = smul.u32 4, %s14
        $region32: #{learned_time_rollout.1} parent=27 // pred_fallthru
          _
        // Predicated region
        $region33: #{learned_time_rollout.1} parent=27 // pred_check
          %p192 = pneg %p60
        $region34: #{learned_time_rollout.1} parent=27 // pred_check_branch
          %194 = sbr.rel (%p192) target = $region36
        $region35: #{learned_time_rollout.1} parent=27 // pred_region
          %s195 = smul.u32 4, %s14
          %p196 = scmp.lt.s32.totalorder %s195, 7
          %s197 = scalar_select %p196, %s195, 7
          %s198 = smul.addr %s197, 2
          %s199 = scalar_lea.vmem %s1, %s198
          %s200 = smul.u32 4, %s14
        $region36: #{learned_time_rollout.1} parent=27 // pred_fallthru
          _
      $region28: #{learned_time_rollout.1} parent=5 // pred_fallthru
        _
      %p201 = scmp.le.s32.totalorder 1, %s14
      %p202 = scmp.lt.s32.totalorder %s14, 3
      %p203 = pnand %p201, %p202
      %p204 = pneg %p203
      // Predicated region
      $region37: #{learned_time_rollout.1} parent=5 // pred_check
        _
      $region38: #{learned_time_rollout.1} parent=5 // pred_check_branch
        %206 = sbr.rel (%p203) target = $region40
      $region39: #{learned_time_rollout.1} parent=5 // pred_region
        %s207 = ssub.s32 %s14, 1
        %s208 = smul.u32 4, %s19
        %p209 = scmp.lt.s32.totalorder %s208, 7
        %s210 = scalar_select %p209, %s208, 7
        %s211 = smul.addr %s210, 2
        %s212 = scalar_lea.vmem %s0, %s211
        %p213 = pneg %p40
        %p214 = pneg %p37
        %s215 = smul.u32 4, %s19
        %p216 = scmp.lt.s32.totalorder %s215, 7
        %s217 = scalar_select %p216, %s215, 7
        %s218 = smul.addr %s217, 2
        %s219 = scalar_lea.vmem %s1, %s218
        %p220 = pneg %p66
        %p221 = pneg %p63
        %p222 = pneg %p87
        %p223 = pneg %p84
        %p224 = pneg %p108
        %p225 = pneg %p105
        %p226 = pneg %p129
        %p227 = pneg %p126
        %p228 = pneg %p155
        %p229 = pneg %p152
        %s230 = sand.u32 %s142, 1
        %s231 = scalar_lea.sflag [#allocation4], %s230
        %s232 = sand.u32 %s142, 1
        %s233 = smul.addr %s232, 8
        %s234 = scalar_lea.vmem [#allocation3], %s233
        %s235 = smul.u32 4, %s19
        %p236 = scmp.lt.s32.totalorder %s235, 7
        %s237 = scalar_select %p236, %s235, 7
        %s238 = smul.addr %s237, 2
        %s239 = scalar_lea.vmem %s0, %s238
        %s240 = smul.u32 4, %s19
        %s241 = smul.u32 4, %s19
        %p242 = scmp.lt.s32.totalorder %s241, 7
        %s243 = scalar_select %p242, %s241, 7
        %s244 = smul.addr %s243, 2
        %s245 = scalar_lea.vmem %s1, %s244
        %s246 = smul.u32 4, %s19
        %s247 = smul.u32 4, %s19
        %p248 = scmp.eq.s32.totalorder %s19, 0
        // Predicated region
        $region41: #{learned_time_rollout.1} parent=39 // pred_check
          %p249 = pneg %p248
        $region42: #{learned_time_rollout.1} parent=39 // pred_check_branch
          %251 = sbr.rel (%p249) target = $region44
        $region43: #{learned_time_rollout.1} parent=39 // pred_region
          %v252 = vld [vmem:[%s2] sm:$0x3]
          %vm253 = vcmask 254976
          %254 = vst.msk [vmem:[#allocation2] sm:$0x3] %vm253, %v252
        $region44: #{learned_time_rollout.1} parent=39 // pred_fallthru
          _
        %v255 = vld [vmem:[%s3] sm:$0xff]
        %v256 = vld [vmem:[%s3 + $0x8] sm:$0xff]
        %v257 = vld [vmem:[%s3 + $0x10] sm:$0xff]
        %v258 = vld [vmem:[%s3 + $0x18] sm:$0xff]
        %s259 = scalar_lea.vmem %s3, 32
        %v260 = vld [vmem:[%s259] sm:$0xff]
        %v261 = vld [vmem:[%s259 + $0x8] sm:$0xff]
        %v262 = vld [vmem:[%s259 + $0x10] sm:$0xff]
        %v263 = vld [vmem:[%s259 + $0x18] sm:$0xff]
        %v264 = vld [vmem:[%s4] sm:$0x1]
        %v265 = vld [vmem:[%s4 + $0x1] sm:$0x1]
        %v266 = vld [vmem:[#allocation2] sm:$0x3]
        %v267 = vld [vmem:[%s239] sm:$0x3]
        %vm268 = vcmask 261120
        %v270 = vsel %vm268, %v266, 0
        %272 = vmatprep.subr.mxu0 0.0
        %273 = vmatpush1.msra.mxu0 %v255
        %274 = vmatprep.subr.mxu0 0.0
        %275 = vmatpush1.msra.mxu0 %v256
        %276 = vmatprep.subr.mxu0 0.0
        %277 = vmatpush1.msra.mxu0 %v257
        %278 = vmatprep.subr.mxu0 0.0
        %279 = vmatpush1.msra.mxu0 %v258
        %280 = vmatprep.subr.mxu0 0.0
        %281 = vmatpush1.msra.mxu0 0.0
        %282 = vmatprep.subr.mxu0 0.0
        %283 = vmatpush1.msra.mxu0 0.0
        %284 = vmatprep.subr.mxu0 0.0
        %285 = vmatpush1.msra.mxu0 0.0
        %286 = vmatprep.subr.mxu0 0.0
        %287 = vmatpush1.msra.mxu0 0.0
        %288 = vmatprep.subr.mxu0 0.0
        %289 = vmatpush1.msra.mxu0 0.0
        %290 = vmatprep.subr.mxu0 0.0
        %291 = vmatpush1.msra.mxu0 0.0
        %292 = vmatprep.subr.mxu0 0.0
        %293 = vmatpush1.msra.mxu0 0.0
        %294 = vmatprep.subr.mxu0 0.0
        %295 = vmatpush1.msra.mxu0 0.0
        %296 = vmatprep.subr.mxu0 0.0
        %297 = vmatpush1.msra.mxu0 0.0
        %298 = vmatprep.subr.mxu0 0.0
        %299 = vmatpush1.msra.mxu0 0.0
        %300 = vmatprep.subr.mxu0 0.0
        %301 = vmatpush1.msra.mxu0 0.0
        %302 = vmatprep.subr.mxu0 0.0
        %303 = vmatpush1.msra.mxu0 0.0
        %304 = vmatprep.subr.mxu0 0.0
        %305 = vmatpush1.msra.mxu0 0.0
        %306 = vmatprep.subr.mxu0 0.0
        %307 = vmatpush1.msra.mxu0 0.0
        %308 = vmatprep.subr.mxu0 0.0
        %309 = vmatpush1.msra.mxu0 0.0
        %310 = vmatprep.subr.mxu0 0.0
        %311 = vmatpush1.msra.mxu0 0.0
        %312 = vmatprep.subr.mxu0 0.0
        %313 = vmatpush1.msra.mxu0 0.0
        %314 = vmatprep.subr.mxu0 0.0
        %315 = vmatpush1.msra.mxu0 0.0
        %316 = vmatprep.subr.mxu0 0.0
        %317 = vmatpush1.msra.mxu0 0.0
        %318 = vmatprep.subr.mxu0 0.0
        %319 = vmatpush1.msra.mxu0 0.0
        %320 = vmatprep.subr.mxu0 0.0
        %321 = vmatpush1.msra.mxu0 0.0
        %322 = vmatprep.subr.mxu0 0.0
        %323 = vmatpush1.msra.mxu0 0.0
        %324 = vmatprep.subr.mxu0 0.0
        %325 = vmatpush1.msra.mxu0 0.0
        %326 = vmatprep.subr.mxu0 0.0
        %327 = vmatpush1.msra.mxu0 0.0
        %328 = vmatprep.subr.mxu0 0.0
        %329 = vmatpush1.msra.mxu0 0.0
        %330 = vmatprep.subr.mxu0 0.0
        %331 = vmatpush1.msra.mxu0 0.0
        %332 = vmatprep.subr.mxu0 0.0
        %333 = vmatpush1.msra.mxu0 0.0
        %334 = vmatprep.subr.mxu0 0.0
        %335 = vmatpush1.msra.mxu0 0.0
        %336 = vmatprep.mubr.f32.mxu0 0.0
        %337 = vmatmul.mubr.f32.gmra.mrb[0].mxu0 %v270
        %v338 = vpop.f32.mrb[0].mxu0
        %v339 = vadd.f32 %v267, %v338
        %v340 = vpop.f32.mrb[0].mxu0
        %341 = vdwg.mxu0
        %v342 = vmax.f32 %v339, 0.0
        %v343 = vld [vmem:[%s245] sm:$0x3]
        %344 = vmatprep.subr.mxu0 0.0
        %345 = vmatpush1.msra.mxu0 %v260
        %346 = vmatprep.subr.mxu0 0.0
        %347 = vmatpush1.msra.mxu0 %v261
        %348 = vmatprep.subr.mxu0 0.0
        %349 = vmatpush1.msra.mxu0 %v262
        %350 = vmatprep.subr.mxu0 0.0
        %351 = vmatpush1.msra.mxu0 %v263
        %352 = vmatprep.subr.mxu0 0.0
        %353 = vmatpush1.msra.mxu0 0.0
        %354 = vmatprep.subr.mxu0 0.0
        %355 = vmatpush1.msra.mxu0 0.0
        %356 = vmatprep.subr.mxu0 0.0
        %357 = vmatpush1.msra.mxu0 0.0
        %358 = vmatprep.subr.mxu0 0.0
        %359 = vmatpush1.msra.mxu0 0.0
        %360 = vmatprep.subr.mxu0 0.0
        %361 = vmatpush1.msra.mxu0 0.0
        %362 = vmatprep.subr.mxu0 0.0
        %363 = vmatpush1.msra.mxu0 0.0
        %364 = vmatprep.subr.mxu0 0.0
        %365 = vmatpush1.msra.mxu0 0.0
        %366 = vmatprep.subr.mxu0 0.0
        %367 = vmatpush1.msra.mxu0 0.0
        %368 = vmatprep.subr.mxu0 0.0
        %369 = vmatpush1.msra.mxu0 0.0
        %370 = vmatprep.subr.mxu0 0.0
        %371 = vmatpush1.msra.mxu0 0.0
        %372 = vmatprep.subr.mxu0 0.0
        %373 = vmatpush1.msra.mxu0 0.0
        %374 = vmatprep.subr.mxu0 0.0
        %375 = vmatpush1.msra.mxu0 0.0
        %376 = vmatprep.subr.mxu0 0.0
        %377 = vmatpush1.msra.mxu0 0.0
        %378 = vmatprep.subr.mxu0 0.0
        %379 = vmatpush1.msra.mxu0 0.0
        %380 = vmatprep.subr.mxu0 0.0
        %381 = vmatpush1.msra.mxu0 0.0
        %382 = vmatprep.subr.mxu0 0.0
        %383 = vmatpush1.msra.mxu0 0.0
        %384 = vmatprep.subr.mxu0 0.0
        %385 = vmatpush1.msra.mxu0 0.0
        %386 = vmatprep.subr.mxu0 0.0
        %387 = vmatpush1.msra.mxu0 0.0
        %388 = vmatprep.subr.mxu0 0.0
        %389 = vmatpush1.msra.mxu0 0.0
        %390 = vmatprep.subr.mxu0 0.0
        %391 = vmatpush1.msra.mxu0 0.0
        %392 = vmatprep.subr.mxu0 0.0
        %393 = vmatpush1.msra.mxu0 0.0
        %394 = vmatprep.subr.mxu0 0.0
        %395 = vmatpush1.msra.mxu0 0.0
        %396 = vmatprep.subr.mxu0 0.0
        %397 = vmatpush1.msra.mxu0 0.0
        %398 = vmatprep.subr.mxu0 0.0
        %399 = vmatpush1.msra.mxu0 0.0
        %400 = vmatprep.subr.mxu0 0.0
        %401 = vmatpush1.msra.mxu0 0.0
        %402 = vmatprep.subr.mxu0 0.0
        %403 = vmatpush1.msra.mxu0 0.0
        %404 = vmatprep.subr.mxu0 0.0
        %405 = vmatpush1.msra.mxu0 0.0
        %406 = vmatprep.subr.mxu0 0.0
        %407 = vmatpush1.msra.mxu0 0.0
        %408 = vmatprep.mubr.f32.mxu0 0.0
        %409 = vmatmul.mubr.f32.gmra.mrb[0].mxu0 %v270
        %v410 = vpop.f32.mrb[0].mxu0
        %v411 = vadd.f32 %v343, %v410
        %v412 = vpop.f32.mrb[0].mxu0
        %413 = vdwg.mxu0
        %v414 = vadd.f32 %v411, %v342
        %vm415 = vcmask 254976
        %v416 = vsel %vm415, %v414, 0.0
        %417 = vadd.xlane.f32.xlu0 %v416
        %v418 = vpop.xlane.xlu0 %417
        %v419 = vmul.f32 %v414, %v414
        %v420 = vsel %vm415, %v419, 0.0
        %421 = vadd.xlane.f32.xlu0 %v420
        %v422 = vpop.xlane.xlu0 %421
        %v423 = vmul.f32 %v418, 0.03125
        %v424 = vmul.f32 %v422, 0.03125
        %v425 = vmul.f32 %v423, %v423
        %v426 = vsub.f32 %v424, %v425
        %v427 = vmax.f32 %v426, 0.0
        %v428 = vadd.f32 %v427, 1e-06
        %v429 = vrsqrt.pop %v428
        %v430 = vsub.f32 %v414, %v423
        %v431 = vlaneseq
        %v432 = vshrl.u32 %v431, 7
        %v433 = vsub.s32 0, %v432
        %v434 = vrot.slane %v264, %v433
        %v435 = vmul.f32 %v429, %v434
        %v436 = vmul.f32 %v430, %v435
        %v437 = vlaneseq
        %v438 = vshrl.u32 %v437, 7
        %v439 = vsub.s32 0, %v438
        %v440 = vrot.slane %v265, %v439
        %v441 = vadd.f32 %v436, %v440
        %442 = vst.msk [vmem:[%s234] sm:$0x3] %vm415, %v441
        %s443 = scalar_lea.vmem %s239, 2
        %v444 = vld [vmem:[%s443] sm:$0x3]
        %v446 = vsel %vm268, %v441, 0
        %448 = vmatprep.subr.mxu0 0.0
        %449 = vmatpush1.msra.mxu0 %v255
        %450 = vmatprep.subr.mxu0 0.0
        %451 = vmatpush1.msra.mxu0 %v256
        %452 = vmatprep.subr.mxu0 0.0
        %453 = vmatpush1.msra.mxu0 %v257
        %454 = vmatprep.subr.mxu0 0.0
        %455 = vmatpush1.msra.mxu0 %v258
        %456 = vmatprep.subr.mxu0 0.0
        %457 = vmatpush1.msra.mxu0 0.0
        %458 = vmatprep.subr.mxu0 0.0
        %459 = vmatpush1.msra.mxu0 0.0
        %460 = vmatprep.subr.mxu0 0.0
        %461 = vmatpush1.msra.mxu0 0.0
        %462 = vmatprep.subr.mxu0 0.0
        %463 = vmatpush1.msra.mxu0 0.0
        %464 = vmatprep.subr.mxu0 0.0
        %465 = vmatpush1.msra.mxu0 0.0
        %466 = vmatprep.subr.mxu0 0.0
        %467 = vmatpush1.msra.mxu0 0.0
        %468 = vmatprep.subr.mxu0 0.0
        %469 = vmatpush1.msra.mxu0 0.0
        %470 = vmatprep.subr.mxu0 0.0
        %471 = vmatpush1.msra.mxu0 0.0
        %472 = vmatprep.subr.mxu0 0.0
        %473 = vmatpush1.msra.mxu0 0.0
        %474 = vmatprep.subr.mxu0 0.0
        %475 = vmatpush1.msra.mxu0 0.0
        %476 = vmatprep.subr.mxu0 0.0
        %477 = vmatpush1.msra.mxu0 0.0
        %478 = vmatprep.subr.mxu0 0.0
        %479 = vmatpush1.msra.mxu0 0.0
        %480 = vmatprep.subr.mxu0 0.0
        %481 = vmatpush1.msra.mxu0 0.0
        %482 = vmatprep.subr.mxu0 0.0
        %483 = vmatpush1.msra.mxu0 0.0
        %484 = vmatprep.subr.mxu0 0.0
        %485 = vmatpush1.msra.mxu0 0.0
        %486 = vmatprep.subr.mxu0 0.0
        %487 = vmatpush1.msra.mxu0 0.0
        %488 = vmatprep.subr.mxu0 0.0
        %489 = vmatpush1.msra.mxu0 0.0
        %490 = vmatprep.subr.mxu0 0.0
        %491 = vmatpush1.msra.mxu0 0.0
        %492 = vmatprep.subr.mxu0 0.0
        %493 = vmatpush1.msra.mxu0 0.0
        %494 = vmatprep.subr.mxu0 0.0
        %495 = vmatpush1.msra.mxu0 0.0
        %496 = vmatprep.subr.mxu0 0.0
        %497 = vmatpush1.msra.mxu0 0.0
        %498 = vmatprep.subr.mxu0 0.0
        %499 = vmatpush1.msra.mxu0 0.0
        %500 = vmatprep.subr.mxu0 0.0
        %501 = vmatpush1.msra.mxu0 0.0
        %502 = vmatprep.subr.mxu0 0.0
        %503 = vmatpush1.msra.mxu0 0.0
        %504 = vmatprep.subr.mxu0 0.0
        %505 = vmatpush1.msra.mxu0 0.0
        %506 = vmatprep.subr.mxu0 0.0
        %507 = vmatpush1.msra.mxu0 0.0
        %508 = vmatprep.subr.mxu0 0.0
        %509 = vmatpush1.msra.mxu0 0.0
        %510 = vmatprep.subr.mxu0 0.0
        %511 = vmatpush1.msra.mxu0 0.0
        %512 = vmatprep.mubr.f32.mxu0 0.0
        %513 = vmatmul.mubr.f32.gmra.mrb[0].mxu0 %v446
        %v514 = vpop.f32.mrb[0].mxu0
        %v515 = vadd.f32 %v444, %v514
        %v516 = vpop.f32.mrb[0].mxu0
        %517 = vdwg.mxu0
        %v518 = vmax.f32 %v515, 0.0
        %s519 = scalar_lea.vmem %s245, 2
        %v520 = vld [vmem:[%s519] sm:$0x3]
        %521 = vmatprep.subr.mxu0 0.0
        %522 = vmatpush1.msra.mxu0 %v260
        %523 = vmatprep.subr.mxu0 0.0
        %524 = vmatpush1.msra.mxu0 %v261
        %525 = vmatprep.subr.mxu0 0.0
        %526 = vmatpush1.msra.mxu0 %v262
        %527 = vmatprep.subr.mxu0 0.0
        %528 = vmatpush1.msra.mxu0 %v263
        %529 = vmatprep.subr.mxu0 0.0
        %530 = vmatpush1.msra.mxu0 0.0
        %531 = vmatprep.subr.mxu0 0.0
        %532 = vmatpush1.msra.mxu0 0.0
        %533 = vmatprep.subr.mxu0 0.0
        %534 = vmatpush1.msra.mxu0 0.0
        %535 = vmatprep.subr.mxu0 0.0
        %536 = vmatpush1.msra.mxu0 0.0
        %537 = vmatprep.subr.mxu0 0.0
        %538 = vmatpush1.msra.mxu0 0.0
        %539 = vmatprep.subr.mxu0 0.0
        %540 = vmatpush1.msra.mxu0 0.0
        %541 = vmatprep.subr.mxu0 0.0
        %542 = vmatpush1.msra.mxu0 0.0
        %543 = vmatprep.subr.mxu0 0.0
        %544 = vmatpush1.msra.mxu0 0.0
        %545 = vmatprep.subr.mxu0 0.0
        %546 = vmatpush1.msra.mxu0 0.0
        %547 = vmatprep.subr.mxu0 0.0
        %548 = vmatpush1.msra.mxu0 0.0
        %549 = vmatprep.subr.mxu0 0.0
        %550 = vmatpush1.msra.mxu0 0.0
        %551 = vmatprep.subr.mxu0 0.0
        %552 = vmatpush1.msra.mxu0 0.0
        %553 = vmatprep.subr.mxu0 0.0
        %554 = vmatpush1.msra.mxu0 0.0
        %555 = vmatprep.subr.mxu0 0.0
        %556 = vmatpush1.msra.mxu0 0.0
        %557 = vmatprep.subr.mxu0 0.0
        %558 = vmatpush1.msra.mxu0 0.0
        %559 = vmatprep.subr.mxu0 0.0
        %560 = vmatpush1.msra.mxu0 0.0
        %561 = vmatprep.subr.mxu0 0.0
        %562 = vmatpush1.msra.mxu0 0.0
        %563 = vmatprep.subr.mxu0 0.0
        %564 = vmatpush1.msra.mxu0 0.0
        %565 = vmatprep.subr.mxu0 0.0
        %566 = vmatpush1.msra.mxu0 0.0
        %567 = vmatprep.subr.mxu0 0.0
        %568 = vmatpush1.msra.mxu0 0.0
        %569 = vmatprep.subr.mxu0 0.0
        %570 = vmatpush1.msra.mxu0 0.0
        %571 = vmatprep.subr.mxu0 0.0
        %572 = vmatpush1.msra.mxu0 0.0
        %573 = vmatprep.subr.mxu0 0.0
        %574 = vmatpush1.msra.mxu0 0.0
        %575 = vmatprep.subr.mxu0 0.0
        %576 = vmatpush1.msra.mxu0 0.0
        %577 = vmatprep.subr.mxu0 0.0
        %578 = vmatpush1.msra.mxu0 0.0
        %579 = vmatprep.subr.mxu0 0.0
        %580 = vmatpush1.msra.mxu0 0.0
        %581 = vmatprep.subr.mxu0 0.0
        %582 = vmatpush1.msra.mxu0 0.0
        %583 = vmatprep.subr.mxu0 0.0
        %584 = vmatpush1.msra.mxu0 0.0
        %585 = vmatprep.mubr.f32.mxu0 0.0
        %586 = vmatmul.mubr.f32.gmra.mrb[0].mxu0 %v446
        %v587 = vpop.f32.mrb[0].mxu0
        %v588 = vadd.f32 %v520, %v587
        %v589 = vpop.f32.mrb[0].mxu0
        %590 = vdwg.mxu0
        %v591 = vadd.f32 %v588, %v518
        %v592 = vsel %vm415, %v591, 0.0
        %593 = vadd.xlane.f32.xlu0 %v592
        %v594 = vpop.xlane.xlu0 %593
        %v595 = vmul.f32 %v591, %v591
        %v596 = vsel %vm415, %v595, 0.0
        %597 = vadd.xlane.f32.xlu0 %v596
        %v598 = vpop.xlane.xlu0 %597
        %v599 = vmul.f32 %v594, 0.03125
        %v600 = vmul.f32 %v598, 0.03125
        %v601 = vmul.f32 %v599, %v599
        %v602 = vsub.f32 %v600, %v601
        %v603 = vmax.f32 %v602, 0.0
        %v604 = vadd.f32 %v603, 1e-06
        %v605 = vrsqrt.pop %v604
        %v606 = vsub.f32 %v591, %v599
        %v607 = vmul.f32 %v605, %v434
        %v608 = vmul.f32 %v606, %v607
        %v609 = vadd.f32 %v608, %v440
        %s610 = scalar_lea.vmem %s234, 2 [#allocation3]
        %611 = vst.msk [vmem:[%s610] sm:$0x3] %vm415, %v609
        %s612 = scalar_lea.vmem %s239, 4
        %v613 = vld [vmem:[%s612] sm:$0x3]
        %v615 = vsel %vm268, %v609, 0
        %617 = vmatprep.subr.mxu0 0.0
        %618 = vmatpush1.msra.mxu0 %v255
        %619 = vmatprep.subr.mxu0 0.0
        %620 = vmatpush1.msra.mxu0 %v256
        %621 = vmatprep.subr.mxu0 0.0
        %622 = vmatpush1.msra.mxu0 %v257
        %623 = vmatprep.subr.mxu0 0.0
        %624 = vmatpush1.msra.mxu0 %v258
        %625 = vmatprep.subr.mxu0 0.0
        %626 = vmatpush1.msra.mxu0 0.0
        %627 = vmatprep.subr.mxu0 0.0
        %628 = vmatpush1.msra.mxu0 0.0
        %629 = vmatprep.subr.mxu0 0.0
        %630 = vmatpush1.msra.mxu0 0.0
        %631 = vmatprep.subr.mxu0 0.0
        %632 = vmatpush1.msra.mxu0 0.0
        %633 = vmatprep.subr.mxu0 0.0
        %634 = vmatpush1.msra.mxu0 0.0
        %635 = vmatprep.subr.mxu0 0.0
        %636 = vmatpush1.msra.mxu0 0.0
        %637 = vmatprep.subr.mxu0 0.0
        %638 = vmatpush1.msra.mxu0 0.0
        %639 = vmatprep.subr.mxu0 0.0
        %640 = vmatpush1.msra.mxu0 0.0
        %641 = vmatprep.subr.mxu0 0.0
        %642 = vmatpush1.msra.mxu0 0.0
        %643 = vmatprep.subr.mxu0 0.0
        %644 = vmatpush1.msra.mxu0 0.0
        %645 = vmatprep.subr.mxu0 0.0
        %646 = vmatpush1.msra.mxu0 0.0
        %647 = vmatprep.subr.mxu0 0.0
        %648 = vmatpush1.msra.mxu0 0.0
        %649 = vmatprep.subr.mxu0 0.0
        %650 = vmatpush1.msra.mxu0 0.0
        %651 = vmatprep.subr.mxu0 0.0
        %652 = vmatpush1.msra.mxu0 0.0
        %653 = vmatprep.subr.mxu0 0.0
        %654 = vmatpush1.msra.mxu0 0.0
        %655 = vmatprep.subr.mxu0 0.0
        %656 = vmatpush1.msra.mxu0 0.0
        %657 = vmatprep.subr.mxu0 0.0
        %658 = vmatpush1.msra.mxu0 0.0
        %659 = vmatprep.subr.mxu0 0.0
        %660 = vmatpush1.msra.mxu0 0.0
        %661 = vmatprep.subr.mxu0 0.0
        %662 = vmatpush1.msra.mxu0 0.0
        %663 = vmatprep.subr.mxu0 0.0
        %664 = vmatpush1.msra.mxu0 0.0
        %665 = vmatprep.subr.mxu0 0.0
        %666 = vmatpush1.msra.mxu0 0.0
        %667 = vmatprep.subr.mxu0 0.0
        %668 = vmatpush1.msra.mxu0 0.0
        %669 = vmatprep.subr.mxu0 0.0
        %670 = vmatpush1.msra.mxu0 0.0
        %671 = vmatprep.subr.mxu0 0.0
        %672 = vmatpush1.msra.mxu0 0.0
        %673 = vmatprep.subr.mxu0 0.0
        %674 = vmatpush1.msra.mxu0 0.0
        %675 = vmatprep.subr.mxu0 0.0
        %676 = vmatpush1.msra.mxu0 0.0
        %677 = vmatprep.subr.mxu0 0.0
        %678 = vmatpush1.msra.mxu0 0.0
        %679 = vmatprep.subr.mxu0 0.0
        %680 = vmatpush1.msra.mxu0 0.0
        %681 = vmatprep.mubr.f32.mxu0 0.0
        %682 = vmatmul.mubr.f32.gmra.mrb[0].mxu0 %v615
        %v683 = vpop.f32.mrb[0].mxu0
        %v684 = vadd.f32 %v613, %v683
        %v685 = vpop.f32.mrb[0].mxu0
        %686 = vdwg.mxu0
        %v687 = vmax.f32 %v684, 0.0
        %s688 = scalar_lea.vmem %s245, 4
        %v689 = vld [vmem:[%s688] sm:$0x3]
        %690 = vmatprep.subr.mxu0 0.0
        %691 = vmatpush1.msra.mxu0 %v260
        %692 = vmatprep.subr.mxu0 0.0
        %693 = vmatpush1.msra.mxu0 %v261
        %694 = vmatprep.subr.mxu0 0.0
        %695 = vmatpush1.msra.mxu0 %v262
        %696 = vmatprep.subr.mxu0 0.0
        %697 = vmatpush1.msra.mxu0 %v263
        %698 = vmatprep.subr.mxu0 0.0
        %699 = vmatpush1.msra.mxu0 0.0
        %700 = vmatprep.subr.mxu0 0.0
        %701 = vmatpush1.msra.mxu0 0.0
        %702 = vmatprep.subr.mxu0 0.0
        %703 = vmatpush1.msra.mxu0 0.0
        %704 = vmatprep.subr.mxu0 0.0
        %705 = vmatpush1.msra.mxu0 0.0
        %706 = vmatprep.subr.mxu0 0.0
        %707 = vmatpush1.msra.mxu0 0.0
        %708 = vmatprep.subr.mxu0 0.0
        %709 = vmatpush1.msra.mxu0 0.0
        %710 = vmatprep.subr.mxu0 0.0
        %711 = vmatpush1.msra.mxu0 0.0
        %712 = vmatprep.subr.mxu0 0.0
        %713 = vmatpush1.msra.mxu0 0.0
        %714 = vmatprep.subr.mxu0 0.0
        %715 = vmatpush1.msra.mxu0 0.0
        %716 = vmatprep.subr.mxu0 0.0
        %717 = vmatpush1.msra.mxu0 0.0
        %718 = vmatprep.subr.mxu0 0.0
        %719 = vmatpush1.msra.mxu0 0.0
        %720 = vmatprep.subr.mxu0 0.0
        %721 = vmatpush1.msra.mxu0 0.0
        %722 = vmatprep.subr.mxu0 0.0
        %723 = vmatpush1.msra.mxu0 0.0
        %724 = vmatprep.subr.mxu0 0.0
        %725 = vmatpush1.msra.mxu0 0.0
        %726 = vmatprep.subr.mxu0 0.0
        %727 = vmatpush1.msra.mxu0 0.0
        %728 = vmatprep.subr.mxu0 0.0
        %729 = vmatpush1.msra.mxu0 0.0
        %730 = vmatprep.subr.mxu0 0.0
        %731 = vmatpush1.msra.mxu0 0.0
        %732 = vmatprep.subr.mxu0 0.0
        %733 = vmatpush1.msra.mxu0 0.0
        %734 = vmatprep.subr.mxu0 0.0
        %735 = vmatpush1.msra.mxu0 0.0
        %736 = vmatprep.subr.mxu0 0.0
        %737 = vmatpush1.msra.mxu0 0.0
        %738 = vmatprep.subr.mxu0 0.0
        %739 = vmatpush1.msra.mxu0 0.0
        %740 = vmatprep.subr.mxu0 0.0
        %741 = vmatpush1.msra.mxu0 0.0
        %742 = vmatprep.subr.mxu0 0.0
        %743 = vmatpush1.msra.mxu0 0.0
        %744 = vmatprep.subr.mxu0 0.0
        %745 = vmatpush1.msra.mxu0 0.0
        %746 = vmatprep.subr.mxu0 0.0
        %747 = vmatpush1.msra.mxu0 0.0
        %748 = vmatprep.subr.mxu0 0.0
        %749 = vmatpush1.msra.mxu0 0.0
        %750 = vmatprep.subr.mxu0 0.0
        %751 = vmatpush1.msra.mxu0 0.0
        %752 = vmatprep.subr.mxu0 0.0
        %753 = vmatpush1.msra.mxu0 0.0
        %754 = vmatprep.mubr.f32.mxu0 0.0
        %755 = vmatmul.mubr.f32.gmra.mrb[0].mxu0 %v615
        %v756 = vpop.f32.mrb[0].mxu0
        %v757 = vadd.f32 %v689, %v756
        %v758 = vpop.f32.mrb[0].mxu0
        %759 = vdwg.mxu0
        %v760 = vadd.f32 %v757, %v687
        %v761 = vsel %vm415, %v760, 0.0
        %762 = vadd.xlane.f32.xlu0 %v761
        %v763 = vpop.xlane.xlu0 %762
        %v764 = vmul.f32 %v760, %v760
        %v765 = vsel %vm415, %v764, 0.0
        %766 = vadd.xlane.f32.xlu0 %v765
        %v767 = vpop.xlane.xlu0 %766
        %v768 = vmul.f32 %v763, 0.03125
        %v769 = vmul.f32 %v767, 0.03125
        %v770 = vmul.f32 %v768, %v768
        %v771 = vsub.f32 %v769, %v770
        %v772 = vmax.f32 %v771, 0.0
        %v773 = vadd.f32 %v772, 1e-06
        %v774 = vrsqrt.pop %v773
        %v775 = vsub.f32 %v760, %v768
        %v776 = vmul.f32 %v774, %v434
        %v777 = vmul.f32 %v775, %v776
        %v778 = vadd.f32 %v777, %v440
        %s779 = scalar_lea.vmem %s234, 4 [#allocation3]
        %780 = vst.msk [vmem:[%s779] sm:$0x3] %vm415, %v778
        %s781 = scalar_lea.vmem %s239, 6
        %v782 = vld [vmem:[%s781] sm:$0x3]
        %v784 = vsel %vm268, %v778, 0
        %786 = vmatprep.subr.mxu0 0.0
        %787 = vmatpush1.msra.mxu0 %v255
        %788 = vmatprep.subr.mxu0 0.0
        %789 = vmatpush1.msra.mxu0 %v256
        %790 = vmatprep.subr.mxu0 0.0
        %791 = vmatpush1.msra.mxu0 %v257
        %792 = vmatprep.subr.mxu0 0.0
        %793 = vmatpush1.msra.mxu0 %v258
        %794 = vmatprep.subr.mxu0 0.0
        %795 = vmatpush1.msra.mxu0 0.0
        %796 = vmatprep.subr.mxu0 0.0
        %797 = vmatpush1.msra.mxu0 0.0
        %798 = vmatprep.subr.mxu0 0.0
        %799 = vmatpush1.msra.mxu0 0.0
        %800 = vmatprep.subr.mxu0 0.0
        %801 = vmatpush1.msra.mxu0 0.0
        %802 = vmatprep.subr.mxu0 0.0
        %803 = vmatpush1.msra.mxu0 0.0
        %804 = vmatprep.subr.mxu0 0.0
        %805 = vmatpush1.msra.mxu0 0.0
        %806 = vmatprep.subr.mxu0 0.0
        %807 = vmatpush1.msra.mxu0 0.0
        %808 = vmatprep.subr.mxu0 0.0
        %809 = vmatpush1.msra.mxu0 0.0
        %810 = vmatprep.subr.mxu0 0.0
        %811 = vmatpush1.msra.mxu0 0.0
        %812 = vmatprep.subr.mxu0 0.0
        %813 = vmatpush1.msra.mxu0 0.0
        %814 = vmatprep.subr.mxu0 0.0
        %815 = vmatpush1.msra.mxu0 0.0
        %816 = vmatprep.subr.mxu0 0.0
        %817 = vmatpush1.msra.mxu0 0.0
        %818 = vmatprep.subr.mxu0 0.0
        %819 = vmatpush1.msra.mxu0 0.0
        %820 = vmatprep.subr.mxu0 0.0
        %821 = vmatpush1.msra.mxu0 0.0
        %822 = vmatprep.subr.mxu0 0.0
        %823 = vmatpush1.msra.mxu0 0.0
        %824 = vmatprep.subr.mxu0 0.0
        %825 = vmatpush1.msra.mxu0 0.0
        %826 = vmatprep.subr.mxu0 0.0
        %827 = vmatpush1.msra.mxu0 0.0
        %828 = vmatprep.subr.mxu0 0.0
        %829 = vmatpush1.msra.mxu0 0.0
        %830 = vmatprep.subr.mxu0 0.0
        %831 = vmatpush1.msra.mxu0 0.0
        %832 = vmatprep.subr.mxu0 0.0
        %833 = vmatpush1.msra.mxu0 0.0
        %834 = vmatprep.subr.mxu0 0.0
        %835 = vmatpush1.msra.mxu0 0.0
        %836 = vmatprep.subr.mxu0 0.0
        %837 = vmatpush1.msra.mxu0 0.0
        %838 = vmatprep.subr.mxu0 0.0
        %839 = vmatpush1.msra.mxu0 0.0
        %840 = vmatprep.subr.mxu0 0.0
        %841 = vmatpush1.msra.mxu0 0.0
        %842 = vmatprep.subr.mxu0 0.0
        %843 = vmatpush1.msra.mxu0 0.0
        %844 = vmatprep.subr.mxu0 0.0
        %845 = vmatpush1.msra.mxu0 0.0
        %846 = vmatprep.subr.mxu0 0.0
        %847 = vmatpush1.msra.mxu0 0.0
        %848 = vmatprep.subr.mxu0 0.0
        %849 = vmatpush1.msra.mxu0 0.0
        %850 = vmatprep.mubr.f32.mxu0 0.0
        %851 = vmatmul.mubr.f32.gmra.mrb[0].mxu0 %v784
        %v852 = vpop.f32.mrb[0].mxu0
        %v853 = vadd.f32 %v782, %v852
        %v854 = vpop.f32.mrb[0].mxu0
        %855 = vdwg.mxu0
        %v856 = vmax.f32 %v853, 0.0
        %s857 = scalar_lea.vmem %s245, 6
        %v858 = vld [vmem:[%s857] sm:$0x3]
        %859 = vmatprep.subr.mxu0 0.0
        %860 = vmatpush1.msra.mxu0 %v260
        %861 = vmatprep.subr.mxu0 0.0
        %862 = vmatpush1.msra.mxu0 %v261
        %863 = vmatprep.subr.mxu0 0.0
        %864 = vmatpush1.msra.mxu0 %v262
        %865 = vmatprep.subr.mxu0 0.0
        %866 = vmatpush1.msra.mxu0 %v263
        %867 = vmatprep.subr.mxu0 0.0
        %868 = vmatpush1.msra.mxu0 0.0
        %869 = vmatprep.subr.mxu0 0.0
        %870 = vmatpush1.msra.mxu0 0.0
        %871 = vmatprep.subr.mxu0 0.0
        %872 = vmatpush1.msra.mxu0 0.0
        %873 = vmatprep.subr.mxu0 0.0
        %874 = vmatpush1.msra.mxu0 0.0
        %875 = vmatprep.subr.mxu0 0.0
        %876 = vmatpush1.msra.mxu0 0.0
        %877 = vmatprep.subr.mxu0 0.0
        %878 = vmatpush1.msra.mxu0 0.0
        %879 = vmatprep.subr.mxu0 0.0
        %880 = vmatpush1.msra.mxu0 0.0
        %881 = vmatprep.subr.mxu0 0.0
        %882 = vmatpush1.msra.mxu0 0.0
        %883 = vmatprep.subr.mxu0 0.0
        %884 = vmatpush1.msra.mxu0 0.0
        %885 = vmatprep.subr.mxu0 0.0
        %886 = vmatpush1.msra.mxu0 0.0
        %887 = vmatprep.subr.mxu0 0.0
        %888 = vmatpush1.msra.mxu0 0.0
        %889 = vmatprep.subr.mxu0 0.0
        %890 = vmatpush1.msra.mxu0 0.0
        %891 = vmatprep.subr.mxu0 0.0
        %892 = vmatpush1.msra.mxu0 0.0
        %893 = vmatprep.subr.mxu0 0.0
        %894 = vmatpush1.msra.mxu0 0.0
        %895 = vmatprep.subr.mxu0 0.0
        %896 = vmatpush1.msra.mxu0 0.0
        %897 = vmatprep.subr.mxu0 0.0
        %898 = vmatpush1.msra.mxu0 0.0
        %899 = vmatprep.subr.mxu0 0.0
        %900 = vmatpush1.msra.mxu0 0.0
        %901 = vmatprep.subr.mxu0 0.0
        %902 = vmatpush1.msra.mxu0 0.0
        %903 = vmatprep.subr.mxu0 0.0
        %904 = vmatpush1.msra.mxu0 0.0
        %905 = vmatprep.subr.mxu0 0.0
        %906 = vmatpush1.msra.mxu0 0.0
        %907 = vmatprep.subr.mxu0 0.0
        %908 = vmatpush1.msra.mxu0 0.0
        %909 = vmatprep.subr.mxu0 0.0
        %910 = vmatpush1.msra.mxu0 0.0
        %911 = vmatprep.subr.mxu0 0.0
        %912 = vmatpush1.msra.mxu0 0.0
        %913 = vmatprep.subr.mxu0 0.0
        %914 = vmatpush1.msra.mxu0 0.0
        %915 = vmatprep.subr.mxu0 0.0
        %916 = vmatpush1.msra.mxu0 0.0
        %917 = vmatprep.subr.mxu0 0.0
        %918 = vmatpush1.msra.mxu0 0.0
        %919 = vmatprep.subr.mxu0 0.0
        %920 = vmatpush1.msra.mxu0 0.0
        %921 = vmatprep.subr.mxu0 0.0
        %922 = vmatpush1.msra.mxu0 0.0
        %923 = vmatprep.mubr.f32.mxu0 0.0
        %924 = vmatmul.mubr.f32.gmra.mrb[0].mxu0 %v784
        %v925 = vpop.f32.mrb[0].mxu0
        %v926 = vadd.f32 %v858, %v925
        %v927 = vpop.f32.mrb[0].mxu0
        %928 = vdwg.mxu0
        %v929 = vadd.f32 %v926, %v856
        %v930 = vsel %vm415, %v929, 0.0
        %931 = vadd.xlane.f32.xlu0 %v930
        %v932 = vpop.xlane.xlu0 %931
        %v933 = vmul.f32 %v929, %v929
        %v934 = vsel %vm415, %v933, 0.0
        %935 = vadd.xlane.f32.xlu0 %v934
        %v936 = vpop.xlane.xlu0 %935
        %v937 = vmul.f32 %v932, 0.03125
        %v938 = vmul.f32 %v936, 0.03125
        %v939 = vmul.f32 %v937, %v937
        %v940 = vsub.f32 %v938, %v939
        %v941 = vmax.f32 %v940, 0.0
        %v942 = vadd.f32 %v941, 1e-06
        %v943 = vrsqrt.pop %v942
        %v944 = vsub.f32 %v929, %v937
        %v945 = vmul.f32 %v943, %v434
        %v946 = vmul.f32 %v944, %v945
        %v947 = vadd.f32 %v946, %v440
        %s948 = scalar_lea.vmem %s234, 6 [#allocation3]
        %949 = vst.msk [vmem:[%s948] sm:$0x3] %vm415, %v947
        %950 = vst.msk [vmem:[#allocation2] sm:$0x3] %vm415, %v947
        %s951 = sand.u32 %s142, 1
        %s952 = scalar_lea.sflag [#allocation4], %s951
        %s953 = sand.u32 %s142, 1
        %s954 = smul.addr %s953, 8
        %s955 = scalar_lea.vmem [#allocation3], %s954
        // Predicated region
        $region45: #{learned_time_rollout.1} parent=39 // pred_check
          %p956 = pneg %p152
        $region46: #{learned_time_rollout.1} parent=39 // pred_check_branch
          %958 = sbr.rel (%p956) target = $region48
        $region47: #{learned_time_rollout.1} parent=39 // pred_region
          %s959 = smul.u32 4, %s19
          %s961 = ssub.s32 128, 128
          %962 = vsyncadd %s952, %s961
          %s963 = smul.addr %s959, 32
          %s964 = scalar_lea.hbm %s5, %s963
          %s965 = sshll.u32 %s955, 4
          %s966 = int_to_ptr.vmem [resolvable:$true] %s965
          %971 = dma.vmem_to_hbm [thread:$0]  %s966, 128, %s964, %s952, 32, 32, 2
        $region48: #{learned_time_rollout.1} parent=39 // pred_fallthru
          _
      $region40: #{learned_time_rollout.1} parent=5 // pred_fallthru
        _
      %p972 = scmp.le.s32.totalorder 2, %s14
      // Predicated region
      $region49: #{learned_time_rollout.1} parent=5 // pred_check
        %p973 = pneg %p972
      $region50: #{learned_time_rollout.1} parent=5 // pred_check_branch
        %975 = sbr.rel (%p973) target = $region52
      $region51: #{learned_time_rollout.1} parent=5 // pred_region
        %s976 = ssub.s32 %s14, 2
        // Predicated region
        $region53: #{learned_time_rollout.1} parent=51 // pred_check
          %p977 = pneg %p158
        $region54: #{learned_time_rollout.1} parent=51 // pred_check_branch
          %979 = sbr.rel (%p977) target = $region56
        $region55: #{learned_time_rollout.1} parent=51 // pred_region
          %s980 = sand.u32 %s143, 1
          %s981 = scalar_lea.sflag [#allocation4], %s980
          %s982 = sand.u32 %s143, 1
          %s983 = smul.addr %s982, 8
          %s984 = scalar_lea.vmem [#allocation3], %s983
          %985 = dma.done %s981, 128
        $region56: #{learned_time_rollout.1} parent=51 // pred_fallthru
          _
      $region52: #{learned_time_rollout.1} parent=5 // pred_fallthru
        _
    $region6: #{learned_time_rollout.1} parent=1 // loop_footer
      %s18 = sadd.s32 1, %s14
    $region7: #{learned_time_rollout.1} parent=1 // loop_footer_branch
      %13 = sbr.rel target = $region3
    $region8: #{learned_time_rollout.1} parent=1 // loop_exit
      _
    %986 = vsyncpa [#allocation4], 1
    %s987 = scalar_lea.sflag [#allocation4], 1
    %988 = vsyncpa %s987, 1

</llo_original>
